<compile_context>
chip_gen: v7x
topology: tpu7x:2x2x1
jax: 0.10.0
libtpu: 0.0.40
codegen_flags: <defaults>
</compile_context>

<pallas_src>
import functools

import jax
import jax.numpy as jnp
from jax.experimental import pallas as pl
from jax.experimental.pallas import tpu as pltpu

MARGIN = 1.0  # module "parameter" -- deterministic, set in-script


def _round_up(x: int, m: int) -> int:
    return ((x + m - 1) // m) * m


def _vmem_budget() -> tuple:
    """Return (per-pipeline-buffer byte budget, vmem_limit_bytes), chip aware."""
    vmem_bytes = 64 * 1024 * 1024               # conservative default (v7x per-TC)
    try:
        vmem_bytes = int(getattr(pltpu.get_tpu_info(),
                                 "vmem_capacity_bytes", vmem_bytes))
    except Exception:
        pass
    if vmem_bytes >= 96 * 1024 * 1024:          # v5e / v6e: 128 MiB per TensorCore
        return 12 * 1024 * 1024, 64 * 1024 * 1024
    return 5 * 1024 * 1024, 48 * 1024 * 1024    # v7x / unknown: 64 MiB per TC


def _choose_tiles(n: int, itemsize: int, budget: int) -> tuple:
    """Pick (row_tile, col_tile) so one pipeline buffer stays within budget."""
    n_pad8 = _round_up(n, 8)
    # Column tile: full width if 8 rows at full width fit the budget,
    # otherwise the largest multiple of 128 that does (column-tiling fallback).
    if 8 * n * itemsize <= budget:
        tile_c = n
    else:
        tile_c = max(128, (budget // (8 * itemsize)) // 128 * 128)
        tile_c = min(tile_c, _round_up(n, 128))
    # Row tile: as many rows as fit the budget at this width (multiple of 8).
    rows = budget // max(1, tile_c * itemsize)
    rows = max(8, (rows // 8) * 8)
    rows = min(rows, 1024, n_pad8)
    # Keep >= ~4 row blocks so multi-TensorCore chips (v7x) get parallel grid
    # work; the ~0.35 us per-step overhead is negligible at these sizes.
    rows = min(rows, max(8, _round_up(pl.cdiv(n, 4), 8)))
    return int(rows), int(tile_c)


def _contrast_loss_kernel(d_ref, row_ref, col_ref, out_ref, *,
                          margin: float, n: int, tile_r: int, tile_c: int,
                          row_mask: bool, col_mask: bool):
    i = pl.program_id(0)
    j = pl.program_id(1)

    def emit(masked: bool):
        d = d_ref[...].astype(jnp.float32)            # (tile_r, tile_c)
        eq = col_ref[...] == row_ref[...]             # (tile_r, tile_c) bool
        hinge = jnp.maximum(jnp.float32(margin) - d, 0.0)
        sel = jnp.where(eq, d, hinge)                 # d (same label) else hinge
        sq = sel * sel                                # d^2 or relu(margin-d)^2

        if masked:
            valid = None
            if row_mask:
                rid = i * tile_r + jax.lax.broadcasted_iota(
                    jnp.int32, (tile_r, 1), 0)
                valid = rid < n
            if col_mask:
                cid = j * tile_c + jax.lax.broadcasted_iota(
                    jnp.int32, (1, tile_c), 1)
                cok = cid < n
                valid = cok if valid is None else jnp.logical_and(valid, cok)
            eq_v = jnp.logical_and(eq, valid)
            ne_v = jnp.logical_and(jnp.logical_not(eq), valid)
            pos = jnp.sum(jnp.where(eq_v, sq, 0.0))
            neg = jnp.sum(jnp.where(ne_v, sq, 0.0))
        else:
            pos = jnp.sum(jnp.where(eq, sq, 0.0))
            neg = jnp.sum(jnp.where(eq, 0.0, sq))

        # Lane-dense (1, 8, 128) output block: pos in lane 0, neg in lane 1
        # of sublane 0 (wrapper only reads [.., 0, 0:2]).
        lane = jax.lax.broadcasted_iota(jnp.int32, (1, 8, 128), 2)
        out_ref[...] = jnp.where(lane == 0, pos,
                                 jnp.where(lane == 1, neg, 0.0))

    if not (row_mask or col_mask):
        emit(False)                                   # every tile is full
    else:
        need = None
        if row_mask:
            need = i == pl.num_programs(0) - 1
        if col_mask:
            last_j = j == pl.num_programs(1) - 1
            need = last_j if need is None else jnp.logical_or(need, last_j)

        @pl.when(jnp.logical_not(need))
        def _():
            emit(False)                               # full tiles: fast path

        @pl.when(need)
        def _():
            emit(True)                                # last row/col tiles: masked


def _pairwise_equal_count(intents_i32: jax.Array) -> jax.Array:
    """sum_{a,b} [label_a == label_b], computed in O(N log N) from labels only."""
    n = intents_i32.shape[0]
    s = jnp.sort(intents_i32)
    if n > 1:
        changes = jnp.concatenate(
            [jnp.zeros((1,), jnp.int32), (s[1:] != s[:-1]).astype(jnp.int32)])
    else:
        changes = jnp.zeros((n,), jnp.int32)
    gid = jnp.cumsum(changes)
    counts = jnp.zeros((n,), jnp.float32).at[gid].add(1.0)
    return jnp.sum(counts * counts)


def contrast_loss(distance_matrix: jax.Array, intents: jax.Array,
                  margin: float = MARGIN) -> jax.Array:
    """Pallas implementation of ContrastLoss.forward. Returns a scalar f32."""
    n = distance_matrix.shape[0]
    assert distance_matrix.shape == (n, n)
    assert intents.shape == (n,)

    # Stream the matrix in its native dtype; upcast to f32 inside the kernel.
    # (Optionally cast to bf16 here on v5e if tolerance allows — mem-bound win.)
    itemsize = jnp.dtype(distance_matrix.dtype).itemsize
    budget, vmem_limit = _vmem_budget()
    tile_r, tile_c = _choose_tiles(n, itemsize, budget)
    num_i = pl.cdiv(n, tile_r)
    num_j = pl.cdiv(n, tile_c)
    row_mask = (n % tile_r) != 0
    col_mask = (n % tile_c) != 0

    intents_i32 = intents.astype(jnp.int32)
    intents_row = intents_i32.reshape(1, n)
    intents_col = intents_i32.reshape(n, 1)

    kernel = functools.partial(
        _contrast_loss_kernel, margin=float(margin), n=n,
        tile_r=tile_r, tile_c=tile_c, row_mask=row_mask, col_mask=col_mask)

    out = pl.pallas_call(
        kernel,
        out_shape=jax.ShapeDtypeStruct((num_i * num_j, 8, 128), jnp.float32),
        grid_spec=pltpu.PrefetchScalarGridSpec(
            num_scalar_prefetch=0,
            grid=(num_i, num_j),
            in_specs=[
                pl.BlockSpec((tile_r, tile_c), lambda i, j: (i, j)),  # distances
                pl.BlockSpec((1, tile_c), lambda i, j: (0, j)),       # labels (row)
                pl.BlockSpec((tile_r, 1), lambda i, j: (i, 0)),       # labels (col)
            ],
            out_specs=pl.BlockSpec((1, 8, 128),
                                   lambda i, j: (i * num_j + j, 0, 0)),
        ),
        compiler_params=pltpu.CompilerParams(
            dimension_semantics=("parallel", "parallel"),
            vmem_limit_bytes=vmem_limit,
        ),
    )(distance_matrix, intents_row, intents_col)

    pos_sum = jnp.sum(out[:, 0, 0])
    neg_sum = jnp.sum(out[:, 0, 1])

    # Sample counts depend only on the labels -> O(N log N) in the wrapper.
    eq_total = _pairwise_equal_count(intents_i32)
    n_f = jnp.float32(n)
    pos_samples = eq_total - n_f
    neg_samples = n_f * n_f - eq_total
    return pos_sum / pos_samples + neg_sum / neg_samples


def _reference(distance_matrix, intents, margin=MARGIN):
    eq = (intents[None, :] == intents[:, None]).astype(jnp.float32)
    n = intents.shape[0]
    pos_samples = jnp.sum(eq) - n
    neg_samples = jnp.sum(1.0 - eq)
    pos_loss = jnp.sum(eq * distance_matrix.astype(jnp.float32) ** 2) / pos_samples
    neg_loss = jnp.sum((1.0 - eq) *
                       jnp.maximum(margin - distance_matrix.astype(jnp.float32),
                                   0.0) ** 2) / neg_samples
    return pos_loss + neg_loss


if __name__ == "__main__":
    key = jax.random.PRNGKey(0)
    k1, k2, k3, k4 = jax.random.split(key, 4)

    # Small batch of embeddings -> [N, N] pairwise distance matrix.
    N = 8
    distance_matrix = jnp.abs(jax.random.normal(k1, (N, N), dtype=jnp.float32))
    intents = jax.random.randint(k2, (N,), 0, 3, dtype=jnp.int32)

    loss = jax.block_until_ready(contrast_loss(distance_matrix, intents, MARGIN))
    ref = _reference(distance_matrix, intents, MARGIN)
    assert jnp.allclose(loss, ref, rtol=1e-5, atol=1e-5), (loss, ref)

    # Second small case that exercises the partial-tile (masked) path.
    N2 = 37
    dm2 = jnp.abs(jax.random.normal(k3, (N2, N2), dtype=jnp.float32))
    intents2 = jax.random.randint(k4, (N2,), 0, 4, dtype=jnp.int32)
    loss2 = jax.block_until_ready(contrast_loss(dm2, intents2, MARGIN))
    ref2 = _reference(dm2, intents2, MARGIN)
    assert jnp.allclose(loss2, ref2, rtol=1e-4, atol=1e-4), (loss2, ref2)

    print("KERNEL_OK")
</pallas_src>

<mosaic_0001>
module attributes {stable_mosaic.version = 11 : i64} {
  func.func @_contrast_loss_kernel(%arg0: i32, %arg1: i32, %arg2: memref<8x8xf32, #tpu.memory_space<vmem>>, %arg3: memref<1x8xi32, #tpu.memory_space<vmem>>, %arg4: memref<8x1xi32, #tpu.memory_space<vmem>>, %arg5: memref<1x8x128xf32, #tpu.memory_space<vmem>>) attributes {dimension_semantics = [#tpu.dimension_semantics<parallel>, #tpu.dimension_semantics<parallel>], iteration_bounds = array<i64: 1, 1>, scalar_prefetch = 0 : i64, scratch_operands = 0 : i64, tpu.core_type = #tpu.core_type<tc>, window_params = [{transform_indices = @transform_0, window_bounds = array<i64: 8, 8>}, {transform_indices = @transform_1, window_bounds = array<i64: 1, 8>}, {transform_indices = @transform_2, window_bounds = array<i64: 8, 1>}, {transform_indices = @transform_3, window_bounds = array<i64: 1, 8, 128>}]} {
    %c0 = arith.constant 0 : index
    %c0_0 = arith.constant 0 : index
    %0 = vector.load %arg2[%c0, %c0_0] : memref<8x8xf32, #tpu.memory_space<vmem>>, vector<8x8xf32>
    %c0_1 = arith.constant 0 : index
    %c0_2 = arith.constant 0 : index
    %1 = vector.load %arg4[%c0_1, %c0_2] : memref<8x1xi32, #tpu.memory_space<vmem>>, vector<8x1xi32>
    %c0_3 = arith.constant 0 : index
    %c0_4 = arith.constant 0 : index
    %2 = vector.load %arg3[%c0_3, %c0_4] : memref<1x8xi32, #tpu.memory_space<vmem>>, vector<1x8xi32>
    %3 = vector.broadcast %1 : vector<8x1xi32> to vector<8x8xi32>
    %4 = vector.broadcast %2 : vector<1x8xi32> to vector<8x8xi32>
    %5 = arith.cmpi eq, %3, %4 : vector<8x8xi32>
    %cst = arith.constant 1.000000e+00 : f32
    %6 = vector.broadcast %cst : f32 to vector<8x8xf32>
    %7 = arith.subf %6, %0 : vector<8x8xf32>
    %cst_5 = arith.constant 0.000000e+00 : f32
    %8 = vector.broadcast %cst_5 : f32 to vector<8x8xf32>
    %9 = arith.maximumf %7, %8 : vector<8x8xf32>
    %10 = arith.select %5, %0, %9 : vector<8x8xi1>, vector<8x8xf32>
    %11 = arith.mulf %10, %10 : vector<8x8xf32>
    %cst_6 = arith.constant 0.000000e+00 : f32
    %12 = vector.broadcast %cst_6 : f32 to vector<8x8xf32>
    %13 = arith.select %5, %11, %12 : vector<8x8xi1>, vector<8x8xf32>
    %14 = vector.shape_cast %13 : vector<8x8xf32> to vector<1x8x8xf32>
    %cst_7 = arith.constant dense<0.000000e+00> : vector<1xf32>
    %15 = vector.multi_reduction <add>, %14, %cst_7 [1, 2] : vector<1x8x8xf32> to vector<1xf32>
    %16 = vector.shape_cast %15 : vector<1xf32> to vector<1x1x1xf32>
    %17 = vector.extract %16[0, 0, 0] : f32 from vector<1x1x1xf32>
    %cst_8 = arith.constant 0.000000e+00 : f32
    %18 = vector.broadcast %cst_8 : f32 to vector<8x8xf32>
    %19 = arith.select %5, %18, %11 : vector<8x8xi1>, vector<8x8xf32>
    %20 = vector.shape_cast %19 : vector<8x8xf32> to vector<1x8x8xf32>
    %cst_9 = arith.constant dense<0.000000e+00> : vector<1xf32>
    %21 = vector.multi_reduction <add>, %20, %cst_9 [1, 2] : vector<1x8x8xf32> to vector<1xf32>
    %22 = vector.shape_cast %21 : vector<1xf32> to vector<1x1x1xf32>
    %23 = vector.extract %22[0, 0, 0] : f32 from vector<1x1x1xf32>
    %24 = tpu.iota {dimensions = array<i32: 2>} : vector<1x8x128xi32>
    %c0_i32 = arith.constant 0 : i32
    %25 = vector.broadcast %c0_i32 : i32 to vector<1x8x128xi32>
    %26 = arith.cmpi eq, %24, %25 : vector<1x8x128xi32>
    %c1_i32 = arith.constant 1 : i32
    %27 = vector.broadcast %c1_i32 : i32 to vector<1x8x128xi32>
    %28 = arith.cmpi eq, %24, %27 : vector<1x8x128xi32>
    %cst_10 = arith.constant 0.000000e+00 : f32
    %29 = vector.broadcast %23 : f32 to vector<1x8x128xf32>
    %30 = vector.broadcast %cst_10 : f32 to vector<1x8x128xf32>
    %31 = arith.select %28, %29, %30 : vector<1x8x128xi1>, vector<1x8x128xf32>
    %32 = vector.broadcast %17 : f32 to vector<1x8x128xf32>
    %33 = arith.select %26, %32, %31 : vector<1x8x128xi1>, vector<1x8x128xf32>
    %c0_11 = arith.constant 0 : index
    %c0_12 = arith.constant 0 : index
    %c0_13 = arith.constant 0 : index
    %34 = vector.load %arg5[%c0_11, %c0_12, %c0_13] : memref<1x8x128xf32, #tpu.memory_space<vmem>>, vector<1x8x128xf32>
    tpu.vector_store %arg5[%c0_11, %c0_12, %c0_13], %33 {strides = array<i32>} : memref<1x8x128xf32, #tpu.memory_space<vmem>>, vector<1x8x128xf32>,
    return
  }
  func.func @transform_0(%arg0: i32, %arg1: i32) -> (i32, i32) {
    %c0_i32 = arith.constant 0 : i32
    return %arg0, %arg1 : i32, i32
  }
  func.func @transform_1(%arg0: i32, %arg1: i32) -> (i32, i32) {
    %c0_i32 = arith.constant 0 : i32
    %c0_i32_0 = arith.constant 0 : i32
    return %c0_i32, %arg1 : i32, i32
  }
  func.func @transform_2(%arg0: i32, %arg1: i32) -> (i32, i32) {
    %c0_i32 = arith.constant 0 : i32
    %c0_i32_0 = arith.constant 0 : i32
    return %arg0, %c0_i32 : i32, i32
  }
  func.func @transform_3(%arg0: i32, %arg1: i32) -> (i32, i32, i32) {
    %c1_i32 = arith.constant 1 : i32
    %0 = arith.muli %arg0, %c1_i32 : i32
    %1 = arith.addi %0, %arg1 : i32
    %c0_i32 = arith.constant 0 : i32
    %c0_i32_0 = arith.constant 0 : i32
    %c0_i32_1 = arith.constant 0 : i32
    return %1, %c0_i32, %c0_i32_0 : i32, i32, i32
  }
}

</mosaic_0001>

<llo_original>
// kernel: tpu_custom_call.1
$region0: #{tpu_custom_call.1}
  #allocation0 [shape = 'u32[]', space=smem, size = 0x4, offset = 0x4, fixed_abs, tag = 'smem constant byte address 0x4 - core index']
  #allocation1 [shape = 'u32[144,128]{1,0:T(1,128)}', space=vmem, size = 0x12000, scoped, tag = 'internal scratch']
  %s0 = inlined_call_operand.vmem [shape: f32[8,8], index: 0, kind: input, shape index: {}]
  %s1 = inlined_call_operand.vmem [shape: s32[1,8], index: 1, kind: input, shape index: {}]
  %s2 = inlined_call_operand.vmem [shape: s32[8,1], index: 2, kind: input, shape index: {}]
  %s3 = inlined_call_operand.hbm [shape: f32[1,8,128], index: 3, kind: output, shape index: {}]
  %s4 = sld [smem:[#allocation0]]
  $region22: #{tpu_custom_call.1} parent=0
    _
  %s6 = ssub.s32 1, %s4
  %s7 = scalar_select 0, %s6, %s4
  $region1: #{tpu_custom_call.1} parent=0
    #allocation2 [shape = 'u8[4096]{0}', space=vmem, size = 0x1000, scoped, tag = 'output window, operand 0, single buffered']
    #allocation3 [shape = 's32[1]{0}', space=sflag, size = 0x4, scoped, tag = 'scoped memory for tpu_custom_call.1']
    %8 = vsyncpa [#allocation3], 0
    // Predicated region
    $region2: #{tpu_custom_call.1} parent=1 // pred_check
      _
    $region3: #{tpu_custom_call.1} parent=1 // pred_check_branch
      %10 = sbr.rel (0) target = $region5
    $region4: #{tpu_custom_call.1} parent=1 // pred_region
      _
    $region5: #{tpu_custom_call.1} parent=1 // pred_fallthru
      _
    // Predicated region
    $region6: #{tpu_custom_call.1} parent=1 // pred_check
      _
    $region7: #{tpu_custom_call.1} parent=1 // pred_check_branch
      %12 = sbr.rel (0) target = $region9
    $region8: #{tpu_custom_call.1} parent=1 // pred_region
      _
    $region9: #{tpu_custom_call.1} parent=1 // pred_fallthru
      _
    // Predicated region
    $region10: #{tpu_custom_call.1} parent=1 // pred_check
      _
    $region11: #{tpu_custom_call.1} parent=1 // pred_check_branch
      %14 = sbr.rel (0) target = $region13
    $region12: #{tpu_custom_call.1} parent=1 // pred_region
      _
    $region13: #{tpu_custom_call.1} parent=1 // pred_fallthru
      _
    %s15 = sadd.s32 0, 0
    %v16 = vld [vmem:[%s0] sm:$0xff]
    %v17 = vld [vmem:[%s2] sm:$0xff]
    %v18 = vld [vmem:[%s1] sm:$0x1]
    %19 = vset.pattern.permute.xlu0 0
    %20 = vperm.xlu0 %19, %v17
    %v21 = vpop.permute.xlu0 %20
    %v22 = vlaneseq
    %v23 = vshrl.u32 %v22, 7
    %v24 = vsub.s32 0, %v23
    %v25 = vrot.slane %v18, %v24
    %vm26 = vcmp.eq.s32.totalorder %v21, %v25
    %v27 = vsub.f32 1.0, %v16
    %v28 = vmax.f32 %v27, 0.0
    %v29 = vsel %vm26, %v16, %v28
    %v30 = vmul.f32 %v29, %v29
    %v31 = vsel %vm26, %v30, 0.0
    %vm32 = vcmask 64512
    %v33 = vsel %vm32, %v31, 0.0
    %34 = vadd.xlane.f32.xlu0 %v33
    %v35 = vpop.xlane.xlu0 %34
    %v36 = vrot.slane %v35, 4
    %v37 = vadd.f32 %v35, %v36
    %v38 = vrot.slane %v37, 2
    %v39 = vadd.f32 %v37, %v38
    %v40 = vrot.slane %v39, 1
    %v41 = vadd.f32 %v39, %v40
    %s42 = vtos %v41
    %v43 = vsel %vm26, 0.0, %v30
    %v44 = vsel %vm32, %v43, 0.0
    %45 = vadd.xlane.f32.xlu0 %v44
    %v46 = vpop.xlane.xlu0 %45
    %v47 = vrot.slane %v46, 4
    %v48 = vadd.f32 %v46, %v47
    %v49 = vrot.slane %v48, 2
    %v50 = vadd.f32 %v48, %v49
    %v51 = vrot.slane %v50, 1
    %v52 = vadd.f32 %v50, %v51
    %s53 = vtos %v52
    %v54 = vlaneseq
    %v55 = vand.u32 %v54, 127
    %vm56 = vcmp.eq.s32.totalorder %v55, 0
    %vm57 = vcmp.eq.s32.totalorder %v55, 1
    %v58 = vstv %s53
    %v59 = vsel %vm57, %v58, 0.0
    %v60 = vstv %s42
    %v61 = vsel %vm56, %v60, %v59
    %62 = vst [vmem:[#allocation2] sm:$0xff] %v61
    // Predicated region
    $region14: #{tpu_custom_call.1} parent=1 // pred_check
      _
    $region15: #{tpu_custom_call.1} parent=1 // pred_check_branch
      %64 = sbr.rel (0) target = $region17
    $region16: #{tpu_custom_call.1} parent=1 // pred_region
      %s65 = sadd.s32 0, 0
      %s67 = ssub.s32 128, 128
      %68 = vsyncadd [#allocation3], %s67
      %s69 = smul.addr %s65, 128
      %s70 = scalar_lea.hbm %s3, %s69
      %s72 = sshll.u32 [#allocation2], 4
      %s73 = int_to_ptr.vmem [resolvable:$true] %s72
      %75 = dma.vmem_to_hbm [thread:$0]  %s73, 128, %s70, [#allocation3]
    $region17: #{tpu_custom_call.1} parent=1 // pred_fallthru
      _
    // Predicated region
    $region18: #{tpu_custom_call.1} parent=1 // pred_check
      _
    $region19: #{tpu_custom_call.1} parent=1 // pred_check_branch
      %77 = sbr.rel (0) target = $region21
    $region20: #{tpu_custom_call.1} parent=1 // pred_region
      %78 = dma.done [#allocation3], 128
    $region21: #{tpu_custom_call.1} parent=1 // pred_fallthru
      _
    %79 = vsyncpa [#allocation3], 1

</llo_original>
